<compile_context>
chip_gen: v6e
topology: v6e:2x2x1
jax: 0.10.0
libtpu: 0.0.40
codegen_flags: <defaults>
</compile_context>

<pallas_src>
import jax
import jax.numpy as jnp
from jax.experimental import pallas as pl
from jax.experimental.pallas import tpu as pltpu

_LANE = 128


def _mlp_kernel(params_ref, x_ref, o_ref):
    # x_ref: (2, tr, 128) f32 feature-major slab (batch folded onto sublanes+lanes).
    x0 = x_ref[0]
    x1 = x_ref[1]
    # params (SMEM f32[9]): [0..3] = W1 (in,out) row-major, [4..5] = b1,
    #                       [6..7] = W2[:, 0],              [8]    = b2
    h0 = jnp.maximum(x0 * params_ref[0] + x1 * params_ref[2] + params_ref[4], 0.0)
    h1 = jnp.maximum(x0 * params_ref[1] + x1 * params_ref[3] + params_ref[5], 0.0)
    o_ref[...] = h0 * params_ref[6] + h1 * params_ref[7] + params_ref[8]


def two_layer_xor_relu(x, w1, b1, w2, b2, *, tile_rows=2048):
    """x: (B, 2) f32; w1: (2,2) stored (in,out); b1: (1,2); w2: (2,1); b2: (1,1) -> (B, 1)."""
    B = x.shape[0]
    R = pl.cdiv(B, _LANE)                       # 128-wide batch rows needed

    # Block rows per grid step: cap at ceil(R/2) so the grid has >=2 steps whenever
    # there is enough work (v7x megacore), and round to a sublane multiple of 8.
    tr = min(tile_rows, pl.cdiv(R, 2))
    tr = max(8, pl.cdiv(tr, 8) * 8)
    r_pad = pl.cdiv(R, tr) * tr
    n_pad = r_pad * _LANE

    # Feature-major (2, r_pad, 128) slab in a single transpose/reshape; pad only if needed.
    x_f32 = x.astype(jnp.float32)
    if n_pad != B:
        x_f32 = jnp.pad(x_f32, ((0, n_pad - B), (0, 0)))
    x_fm = x_f32.T.reshape(2, r_pad, _LANE)

    # All 9 parameters flattened into a single SMEM vector.
    params = jnp.concatenate(
        [w1.reshape(-1), b1.reshape(-1), w2.reshape(-1), b2.reshape(-1)]
    ).astype(jnp.float32)

    out = pl.pallas_call(
        _mlp_kernel,
        out_shape=jax.ShapeDtypeStruct((r_pad, _LANE), jnp.float32),
        grid=(r_pad // tr,),
        in_specs=[
            pl.BlockSpec(memory_space=pltpu.MemorySpace.SMEM),      # params (untiled)
            pl.BlockSpec((2, tr, _LANE), lambda i: (0, i, 0)),      # feature-major x slab
        ],
        out_specs=pl.BlockSpec((tr, _LANE), lambda i: (i, 0)),
        compiler_params=pltpu.CompilerParams(
            dimension_semantics=("parallel",)),
    )(params, x_fm)

    # (r_pad, 128) row-major == padded batch order; strip padding, restore (B, 1).
    return out.reshape(n_pad, 1)[:B]


def _init_params(key):
    """PyTorch nn.Linear default init U(-1/sqrt(fan_in), 1/sqrt(fan_in)); weights stored (in, out)."""
    k1, k2, k3, k4 = jax.random.split(key, 4)
    bound = 1.0 / jnp.sqrt(2.0)  # fan_in = 2 for both layers
    w1 = jax.random.uniform(k1, (2, 2), jnp.float32, -bound, bound)
    b1 = jax.random.uniform(k2, (1, 2), jnp.float32, -bound, bound)
    w2 = jax.random.uniform(k3, (2, 1), jnp.float32, -bound, bound)
    b2 = jax.random.uniform(k4, (1, 1), jnp.float32, -bound, bound)
    return w1, b1, w2, b2


def _reference(x, w1, b1, w2, b2):
    h = jnp.maximum(x @ w1 + b1, 0.0)
    return h @ w2 + b2


if __name__ == "__main__":
    key = jax.random.PRNGKey(0)
    kp, kx, kb = jax.random.split(key, 3)
    w1, b1, w2, b2 = _init_params(kp)

    # Classic XOR inputs plus a few random rows (batch = 8, features = 2).
    xor_inputs = jnp.array(
        [[0.0, 0.0], [0.0, 1.0], [1.0, 0.0], [1.0, 1.0]], dtype=jnp.float32
    )
    rand_inputs = jax.random.normal(kx, (4, 2), dtype=jnp.float32)
    x = jnp.concatenate([xor_inputs, rand_inputs], axis=0)  # (8, 2)

    out = jax.block_until_ready(two_layer_xor_relu(x, w1, b1, w2, b2))
    ref = _reference(x, w1, b1, w2, b2)
    assert out.shape == (8, 1), out.shape
    assert jnp.allclose(out, ref, atol=1e-5, rtol=1e-5), (out, ref)

    # Second check: larger batch to exercise the multi-step grid (2 steps with
    # default tile_rows: R=16 -> tr=8), padding path, and double-buffered DMA.
    x_big = jax.random.normal(kb, (2000, 2), dtype=jnp.float32)
    out_big = jax.block_until_ready(two_layer_xor_relu(x_big, w1, b1, w2, b2))
    ref_big = _reference(x_big, w1, b1, w2, b2)
    assert out_big.shape == (2000, 1), out_big.shape
    assert jnp.allclose(out_big, ref_big, atol=1e-5, rtol=1e-5)

    print("KERNEL_OK")
</pallas_src>

<mosaic_0001>
module attributes {stable_mosaic.version = 11 : i64} {
  func.func @_mlp_kernel(%arg0: i32, %arg1: memref<9xf32, #tpu.memory_space<smem>>, %arg2: memref<2x8x128xf32, #tpu.memory_space<vmem>>, %arg3: memref<8x128xf32, #tpu.memory_space<vmem>>) attributes {dimension_semantics = [#tpu.dimension_semantics<parallel>], iteration_bounds = array<i64: 1>, scalar_prefetch = 0 : i64, scratch_operands = 0 : i64, tpu.core_type = #tpu.core_type<tc>, window_params = [{transform_indices = @transform_0, window_bounds = array<i64: 9>}, {transform_indices = @transform_1, window_bounds = array<i64: 2, 8, 128>}, {transform_indices = @transform_2, window_bounds = array<i64: 8, 128>}]} {
    %c0 = arith.constant 0 : index
    %c0_0 = arith.constant 0 : index
    %c0_1 = arith.constant 0 : index
    %0 = vector.load %arg2[%c0, %c0_0, %c0_1] : memref<2x8x128xf32, #tpu.memory_space<vmem>>, vector<1x8x128xf32>
    %1 = vector.shape_cast %0 : vector<1x8x128xf32> to vector<8x128xf32>
    %c1 = arith.constant 1 : index
    %c0_2 = arith.constant 0 : index
    %c0_3 = arith.constant 0 : index
    %2 = vector.load %arg2[%c1, %c0_2, %c0_3] : memref<2x8x128xf32, #tpu.memory_space<vmem>>, vector<1x8x128xf32>
    %3 = vector.shape_cast %2 : vector<1x8x128xf32> to vector<8x128xf32>
    %c0_4 = arith.constant 0 : index
    %4 = memref.load %arg1[%c0_4] : memref<9xf32, #tpu.memory_space<smem>>
    %5 = vector.broadcast %4 : f32 to vector<8x128xf32>
    %6 = arith.mulf %1, %5 : vector<8x128xf32>
    %c2 = arith.constant 2 : index
    %7 = memref.load %arg1[%c2] : memref<9xf32, #tpu.memory_space<smem>>
    %8 = vector.broadcast %7 : f32 to vector<8x128xf32>
    %9 = arith.mulf %3, %8 : vector<8x128xf32>
    %10 = arith.addf %6, %9 : vector<8x128xf32>
    %c4 = arith.constant 4 : index
    %11 = memref.load %arg1[%c4] : memref<9xf32, #tpu.memory_space<smem>>
    %12 = vector.broadcast %11 : f32 to vector<8x128xf32>
    %13 = arith.addf %10, %12 : vector<8x128xf32>
    %cst = arith.constant 0.000000e+00 : f32
    %14 = vector.broadcast %cst : f32 to vector<8x128xf32>
    %15 = arith.maximumf %13, %14 : vector<8x128xf32>
    %c1_5 = arith.constant 1 : index
    %16 = memref.load %arg1[%c1_5] : memref<9xf32, #tpu.memory_space<smem>>
    %17 = vector.broadcast %16 : f32 to vector<8x128xf32>
    %18 = arith.mulf %1, %17 : vector<8x128xf32>
    %c3 = arith.constant 3 : index
    %19 = memref.load %arg1[%c3] : memref<9xf32, #tpu.memory_space<smem>>
    %20 = vector.broadcast %19 : f32 to vector<8x128xf32>
    %21 = arith.mulf %3, %20 : vector<8x128xf32>
    %22 = arith.addf %18, %21 : vector<8x128xf32>
    %c5 = arith.constant 5 : index
    %23 = memref.load %arg1[%c5] : memref<9xf32, #tpu.memory_space<smem>>
    %24 = vector.broadcast %23 : f32 to vector<8x128xf32>
    %25 = arith.addf %22, %24 : vector<8x128xf32>
    %cst_6 = arith.constant 0.000000e+00 : f32
    %26 = vector.broadcast %cst_6 : f32 to vector<8x128xf32>
    %27 = arith.maximumf %25, %26 : vector<8x128xf32>
    %c6 = arith.constant 6 : index
    %28 = memref.load %arg1[%c6] : memref<9xf32, #tpu.memory_space<smem>>
    %29 = vector.broadcast %28 : f32 to vector<8x128xf32>
    %30 = arith.mulf %15, %29 : vector<8x128xf32>
    %c7 = arith.constant 7 : index
    %31 = memref.load %arg1[%c7] : memref<9xf32, #tpu.memory_space<smem>>
    %32 = vector.broadcast %31 : f32 to vector<8x128xf32>
    %33 = arith.mulf %27, %32 : vector<8x128xf32>
    %34 = arith.addf %30, %33 : vector<8x128xf32>
    %c8 = arith.constant 8 : index
    %35 = memref.load %arg1[%c8] : memref<9xf32, #tpu.memory_space<smem>>
    %36 = vector.broadcast %35 : f32 to vector<8x128xf32>
    %37 = arith.addf %34, %36 : vector<8x128xf32>
    %c0_7 = arith.constant 0 : index
    %c0_8 = arith.constant 0 : index
    %38 = vector.load %arg3[%c0_7, %c0_8] : memref<8x128xf32, #tpu.memory_space<vmem>>, vector<8x128xf32>
    tpu.vector_store %arg3[%c0_7, %c0_8], %37 {strides = array<i32>} : memref<8x128xf32, #tpu.memory_space<vmem>>, vector<8x128xf32>,
    return
  }
  func.func @transform_0(%arg0: i32) -> i32 {
    %c0_i32 = arith.constant 0 : i32
    %c0_i32_0 = arith.constant 0 : i32
    return %c0_i32 : i32
  }
  func.func @transform_1(%arg0: i32) -> (i32, i32, i32) {
    %c0_i32 = arith.constant 0 : i32
    %c0_i32_0 = arith.constant 0 : i32
    %c0_i32_1 = arith.constant 0 : i32
    return %c0_i32, %arg0, %c0_i32_0 : i32, i32, i32
  }
  func.func @transform_2(%arg0: i32) -> (i32, i32) {
    %c0_i32 = arith.constant 0 : i32
    %c0_i32_0 = arith.constant 0 : i32
    return %arg0, %c0_i32 : i32, i32
  }
}

</mosaic_0001>

<llo_original>
// kernel: tpu_custom_call.1
$region0: #{tpu_custom_call.1}
  #allocation0 [shape = 'u32[]', space=smem, size = 0x4, offset = 0x4, fixed_abs, tag = 'smem constant byte address 0x4 - core index']
  #allocation1 [shape = 'u32[144,128]{1,0:T(1,128)}', space=vmem, size = 0x12000, scoped, tag = 'internal scratch']
  %s0 = inlined_call_operand.hbm [shape: f32[9], index: 0, kind: input, shape index: {}]
  %s1 = inlined_call_operand.hbm [shape: f32[2,8,128], index: 1, kind: input, shape index: {}]
  %s2 = inlined_call_operand.hbm [shape: f32[8,128], index: 2, kind: output, shape index: {}]
  %s3 = sld [smem:[#allocation0]]
  $region26: #{tpu_custom_call.1} parent=0
    _
  %s5 = ssub.s32 1, %s3
  %s6 = scalar_select 0, %s5, %s3
  $region1: #{tpu_custom_call.1} parent=0
    #allocation2 [shape = 'u8[512]{0}', space=smem, size = 0x200, scoped, tag = 'input window, operand 0, single buffered']
    #allocation3 [shape = 's32[1]{0}', space=sflag, size = 0x4, scoped, tag = 'scoped memory for tpu_custom_call.1']
    #allocation4 [shape = 's32[1]{0}', space=sflag, size = 0x4, scoped, tag = 'scoped memory for tpu_custom_call.1']
    #allocation5 [shape = 's32[1]{0}', space=sflag, size = 0x4, scoped, tag = 'scoped memory for tpu_custom_call.1']
    #allocation6 [shape = 'u8[8192]{0}', space=vmem, size = 0x2000, scoped, tag = 'input window, operand 1, single buffered']
    #allocation7 [shape = 'u8[4096]{0}', space=vmem, size = 0x1000, scoped, tag = 'output window, operand 0, single buffered']
    %7 = vsyncpa [#allocation5], 0
    %8 = vsyncpa [#allocation3], 0
    %9 = vsyncpa [#allocation4], 0
    // Predicated region
    $region2: #{tpu_custom_call.1} parent=1 // pred_check
      _
    $region3: #{tpu_custom_call.1} parent=1 // pred_check_branch
      %11 = sbr.rel (0) target = $region5
    $region4: #{tpu_custom_call.1} parent=1 // pred_region
      %s13 = ssub.s32 16, 16
      %14 = vsyncadd [#allocation5], %s13
      %17 = dma.hbm_to_smem %s0, 16, [#allocation2], [#allocation5]
    $region5: #{tpu_custom_call.1} parent=1 // pred_fallthru
      _
    // Predicated region
    $region6: #{tpu_custom_call.1} parent=1 // pred_check
      _
    $region7: #{tpu_custom_call.1} parent=1 // pred_check_branch
      %19 = sbr.rel (0) target = $region9
    $region8: #{tpu_custom_call.1} parent=1 // pred_region
      %s21 = ssub.s32 256, 256
      %22 = vsyncadd [#allocation3], %s21
      %s23 = sshll.u32 [#allocation6], 4
      %s24 = int_to_ptr.vmem [resolvable:$true] %s23
      %29 = dma.hbm_to_vmem [thread:$0]  %s1, 256, %s24, [#allocation3], 128, 128, 8
    $region9: #{tpu_custom_call.1} parent=1 // pred_fallthru
      _
    // Predicated region
    $region10: #{tpu_custom_call.1} parent=1 // pred_check
      _
    $region11: #{tpu_custom_call.1} parent=1 // pred_check_branch
      %31 = sbr.rel (0) target = $region13
    $region12: #{tpu_custom_call.1} parent=1 // pred_region
      %32 = dma.done [#allocation5], 16
    $region13: #{tpu_custom_call.1} parent=1 // pred_fallthru
      _
    // Predicated region
    $region14: #{tpu_custom_call.1} parent=1 // pred_check
      _
    $region15: #{tpu_custom_call.1} parent=1 // pred_check_branch
      %34 = sbr.rel (0) target = $region17
    $region16: #{tpu_custom_call.1} parent=1 // pred_region
      %35 = dma.done [#allocation3], 256
    $region17: #{tpu_custom_call.1} parent=1 // pred_fallthru
      _
    %36 = sfence
    %v37 = vld [vmem:[#allocation6] sm:$0xff]
    %s38 = scalar_lea.vmem [#allocation6], 8
    %v39 = vld [vmem:[%s38] sm:$0xff]
    %s40 = sld [smem:[#allocation2]]
    %v41 = vstv %s40
    %v42 = vmul.f32 %v37, %v41
    %s43 = sld [smem:[#allocation2 + $0x2]]
    %v44 = vstv %s43
    %v45 = vmul.f32 %v39, %v44
    %v46 = vadd.f32 %v42, %v45
    %s47 = sld [smem:[#allocation2 + $0x4]]
    %v48 = vstv %s47
    %v49 = vadd.f32 %v46, %v48
    %v50 = vmax.f32 %v49, 0.0
    %s51 = sld [smem:[#allocation2 + $0x1]]
    %v52 = vstv %s51
    %v53 = vmul.f32 %v37, %v52
    %s54 = sld [smem:[#allocation2 + $0x3]]
    %v55 = vstv %s54
    %v56 = vmul.f32 %v39, %v55
    %v57 = vadd.f32 %v53, %v56
    %s58 = sld [smem:[#allocation2 + $0x5]]
    %v59 = vstv %s58
    %v60 = vadd.f32 %v57, %v59
    %v61 = vmax.f32 %v60, 0.0
    %s62 = sld [smem:[#allocation2 + $0x6]]
    %v63 = vstv %s62
    %v64 = vmul.f32 %v50, %v63
    %s65 = sld [smem:[#allocation2 + $0x7]]
    %v66 = vstv %s65
    %v67 = vmul.f32 %v61, %v66
    %v68 = vadd.f32 %v64, %v67
    %s69 = sld [smem:[#allocation2 + $0x8]]
    %v70 = vstv %s69
    %v71 = vadd.f32 %v68, %v70
    %72 = vst [vmem:[#allocation7] sm:$0xff] %v71
    // Predicated region
    $region18: #{tpu_custom_call.1} parent=1 // pred_check
      _
    $region19: #{tpu_custom_call.1} parent=1 // pred_check_branch
      %74 = sbr.rel (0) target = $region21
    $region20: #{tpu_custom_call.1} parent=1 // pred_region
      %s76 = ssub.s32 128, 128
      %77 = vsyncadd [#allocation4], %s76
      %s79 = sshll.u32 [#allocation7], 4
      %s80 = int_to_ptr.vmem [resolvable:$true] %s79
      %82 = dma.vmem_to_hbm [thread:$0]  %s80, 128, %s2, [#allocation4]
    $region21: #{tpu_custom_call.1} parent=1 // pred_fallthru
      _
    // Predicated region
    $region22: #{tpu_custom_call.1} parent=1 // pred_check
      _
    $region23: #{tpu_custom_call.1} parent=1 // pred_check_branch
      %84 = sbr.rel (0) target = $region25
    $region24: #{tpu_custom_call.1} parent=1 // pred_region
      %85 = dma.done [#allocation4], 128
    $region25: #{tpu_custom_call.1} parent=1 // pred_fallthru
      _
    %86 = vsyncpa [#allocation3], 1
    %87 = vsyncpa [#allocation4], 1
    %88 = vsyncpa [#allocation5], 1

</llo_original>
